<compile_context>
chip_gen: v7x
topology: tpu7x:2x2x1
jax: 0.10.0
libtpu: 0.0.40
codegen_flags: <defaults>
</compile_context>

<pallas_src>
import math

import jax
import jax.numpy as jnp
from jax.experimental import pallas as pl
from jax.experimental.pallas import tpu as pltpu

_INV_SQRT2 = 1.0 / math.sqrt(2.0)


# ---------------------------------------------------------------------------
# Kernels
# ---------------------------------------------------------------------------
def _gelu_exact(h):
    # Exact (erf-based) GELU, matching torch.nn.GELU() default.  Runs in the
    # dtype of `h` (f32 on v5e/unknown, bf16 on v6e/v7x).
    return 0.5 * h * (1.0 + jax.lax.erf(h * _INV_SQRT2))


def mlp_kernel_resident(x_ref, w1_ref, b1_ref, w2_ref, b2_ref, o_ref):
    """Weight-resident path: grid = (M tiles,), W1/W2 blocks never change."""
    h = jnp.dot(x_ref[...], w1_ref[...], preferred_element_type=jnp.float32)
    # Epilogue precision follows b1's dtype (chosen in the wrapper).
    h = h.astype(b1_ref.dtype) + b1_ref[...]
    h = _gelu_exact(h)
    # TODO(synk): training-mode dropout (p) would use pltpu.prng_seed +
    # pltpu.prng_random_bits for a keep mask; eval-mode nn.Dropout is identity.
    out = jnp.dot(h.astype(w2_ref.dtype), w2_ref[...],
                  preferred_element_type=jnp.float32)
    o_ref[...] = (out + b2_ref[...].astype(jnp.float32)).astype(o_ref.dtype)


def mlp_kernel_streamed(x_ref, w1_ref, b1_ref, w2_ref, b2_ref, o_ref, acc_ref):
    """Streamed path: grid = (M tiles, hidden tiles), f32 accumulator."""
    j = pl.program_id(1)

    @pl.when(j == 0)
    def _init():
        acc_ref[...] = jnp.zeros_like(acc_ref)

    h = jnp.dot(x_ref[...], w1_ref[...], preferred_element_type=jnp.float32)
    h = h.astype(b1_ref.dtype) + b1_ref[...]
    h = _gelu_exact(h)
    acc_ref[...] += jnp.dot(h.astype(w2_ref.dtype), w2_ref[...],
                            preferred_element_type=jnp.float32)

    @pl.when(j == pl.num_programs(1) - 1)
    def _finalize():
        o_ref[...] = (acc_ref[...] + b2_ref[...].astype(jnp.float32)
                      ).astype(o_ref.dtype)


# ---------------------------------------------------------------------------
# Tiling / hardware helpers
# ---------------------------------------------------------------------------
def _round_up(x, m):
    return ((x + m - 1) // m) * m


def _tpu_vmem_capacity():
    try:
        cap = int(pltpu.get_tpu_info().vmem_capacity_bytes)
        if cap > 0:
            return cap
    except Exception:
        pass
    return 128 * 1024 * 1024  # v5e/v6e default


def _device_kind():
    try:
        return jax.devices()[0].device_kind.lower()
    except Exception:
        return ""


def _weights_vmem_bytes(d_in, th, d_out):
    # W1/W2 hidden-blocks (bf16) + b1/b2 blocks; budget 2 buffers per input
    # block (Pallas double-buffers even blocks whose index never changes).
    return 2 * (d_in * th * 2 + th * 4 + th * d_out * 2 + d_out * 4)


def _per_row_vmem_bytes(d_in, th, d_out, out_itemsize):
    # Per M-row: x tile (bf16, 2 bufs) + out tile (2 bufs) + f32 accumulator
    # + the (tm, th) hidden intermediate (f32 + its bf16 cast).
    return (2 * d_in * 2) + (2 * d_out * out_itemsize) + (d_out * 4) + th * 6


def _choose_tiles(m, d_in, d_hidden, d_out, out_itemsize, vmem_cap, multi_core):
    """Pick (tm, th).  Prefer weight residency (th == d_hidden), then big tm."""
    budget = int(0.7 * vmem_cap)  # leave slack for compiler/internal scratch

    if m <= 128 or (not multi_core and m <= 1024):
        tm_pref = m  # single full-array M block, no padding
    else:
        tm_pref = 1024
        if multi_core:
            # Guarantee >= 2 M tiles so the "parallel" axis shards across the
            # two TensorCores of a v7x-class chip.
            tm_pref = min(tm_pref, max(128, _round_up(pl.cdiv(m, 2), 128)))

    tm_cands = []
    for t in (tm_pref, 1024, 512, 256, 128):
        if t <= tm_pref and t not in tm_cands:
            tm_cands.append(t)

    th_cands = [d_hidden]
    for t in (2048, 1024, 512, 256):
        if t < d_hidden and d_hidden % t == 0:
            th_cands.append(t)

    for th in th_cands:
        for tm in tm_cands:
            need = (_weights_vmem_bytes(d_in, th, d_out)
                    + tm * _per_row_vmem_bytes(d_in, th, d_out, out_itemsize))
            if need <= budget:
                return tm, th
    return tm_cands[-1], th_cands[-1]


# ---------------------------------------------------------------------------
# Wrapper
# ---------------------------------------------------------------------------
def mlp_forward(x, w1, b1, w2, b2):
    """Eval-mode ViT MLP: GELU(x @ w1 + b1) @ w2 + b2.

    x : (N, S, d_in); w1 : (d_in, d_hidden); b1 : (d_hidden,)
    w2 : (d_hidden, d_out); b2 : (d_out,)
    """
    n, s, d_in = x.shape
    d_hidden = w1.shape[1]
    d_out = w2.shape[1]
    m = n * s

    vmem_cap = _tpu_vmem_capacity()
    kind = _device_kind()
    # v7x: 2 TensorCores / 64 MiB VMEM per core.  Use both signals.
    multi_core = ("v7" in kind) or (vmem_cap <= 80 * 1024 * 1024)
    # bf16 epilogue only where the VPU has a native bf16 path (v6e/v7x);
    # keep f32 on v5e / unknown chips.
    epilogue_dtype = jnp.bfloat16 if ("v6" in kind or "v7" in kind) else jnp.float32

    out_itemsize = jnp.dtype(x.dtype).itemsize
    tm, th = _choose_tiles(m, d_in, d_hidden, d_out, out_itemsize,
                           vmem_cap, multi_core)

    m_pad = _round_up(m, tm)
    m_tiles = m_pad // tm
    h_tiles = d_hidden // th

    x2 = x.reshape(m, d_in)
    if m_pad != m:
        x2 = jnp.pad(x2, ((0, m_pad - m), (0, 0)))

    # bf16 matmul operands (MXU-native); b1 in epilogue dtype, b2 stays f32.
    x_bf = x2.astype(jnp.bfloat16)
    w1_bf = w1.astype(jnp.bfloat16)
    w2_bf = w2.astype(jnp.bfloat16)
    b1_2 = b1.reshape(1, d_hidden).astype(epilogue_dtype)
    b2_2 = b2.reshape(1, d_out).astype(jnp.float32)

    # Explicit VMEM budget, clamped to physical capacity minus headroom
    # (v7x only has 64 MiB per TensorCore).
    est = (_weights_vmem_bytes(d_in, th, d_out)
           + tm * _per_row_vmem_bytes(d_in, th, d_out, out_itemsize))
    headroom = 8 * 1024 * 1024
    vmem_limit = int(min(max(int(1.25 * est) + (4 << 20), 32 << 20),
                         vmem_cap - headroom))

    if h_tiles == 1:
        # Weight-resident path: W1/W2/b1/b2 block indices are constant across
        # the whole grid -> DMA'd from HBM exactly once per call.
        grid_spec = pltpu.PrefetchScalarGridSpec(
            num_scalar_prefetch=0,
            grid=(m_tiles,),
            in_specs=[
                pl.BlockSpec((tm, d_in), lambda i: (i, 0)),          # x tile
                pl.BlockSpec((d_in, d_hidden), lambda i: (0, 0)),    # W1 (resident)
                pl.BlockSpec((1, d_hidden), lambda i: (0, 0)),       # b1 (resident)
                pl.BlockSpec((d_hidden, d_out), lambda i: (0, 0)),   # W2 (resident)
                pl.BlockSpec((1, d_out), lambda i: (0, 0)),          # b2 (resident)
            ],
            out_specs=pl.BlockSpec((tm, d_out), lambda i: (i, 0)),
        )
        kernel = mlp_kernel_resident
        dims = ("parallel",)
    else:
        # Streamed path for hidden dims too large to hold resident.
        # (If profiling shows exposed W DMA here, bump the W1/W2 specs to
        #  pipeline_mode=pl.Buffered(3).)
        grid_spec = pltpu.PrefetchScalarGridSpec(
            num_scalar_prefetch=0,
            grid=(m_tiles, h_tiles),
            in_specs=[
                pl.BlockSpec((tm, d_in), lambda i, j: (i, 0)),       # x tile
                pl.BlockSpec((d_in, th), lambda i, j: (0, j)),       # W1 block
                pl.BlockSpec((1, th), lambda i, j: (0, j)),          # b1 block
                pl.BlockSpec((th, d_out), lambda i, j: (j, 0)),      # W2 block
                pl.BlockSpec((1, d_out), lambda i, j: (0, 0)),       # b2
            ],
            out_specs=pl.BlockSpec((tm, d_out), lambda i, j: (i, 0)),
            scratch_shapes=[pltpu.VMEM((tm, d_out), jnp.float32)],
        )
        kernel = mlp_kernel_streamed
        dims = ("parallel", "arbitrary")

    out = pl.pallas_call(
        kernel,
        out_shape=jax.ShapeDtypeStruct((m_pad, d_out), x.dtype),
        grid_spec=grid_spec,
        compiler_params=pltpu.CompilerParams(
            dimension_semantics=dims,
            vmem_limit_bytes=vmem_limit,
        ),
    )(x_bf, w1_bf, b1_2, w2_bf, b2_2)

    if m_pad != m:
        out = out[:m]
    return out.reshape(n, s, d_out)


def init_linear_params(key, fan_in, fan_out):
    """Mimics torch.nn.Linear default init: U(-1/sqrt(fan_in), 1/sqrt(fan_in)).
    Weight is returned as (fan_in, fan_out) (transposed vs. torch's (out, in))."""
    kw, kb = jax.random.split(key)
    bound = 1.0 / math.sqrt(fan_in)
    w = jax.random.uniform(kw, (fan_in, fan_out), jnp.float32, -bound, bound)
    b = jax.random.uniform(kb, (fan_out,), jnp.float32, -bound, bound)
    return w, b


if __name__ == "__main__":
    # Small shapes consistent with the module: (n_samples, n_patches+1, in_features)
    n_samples, n_patches_p1 = 2, 17          # 16 patches + 1 CLS token
    in_features, hidden_features, out_features = 32, 64, 32

    key = jax.random.PRNGKey(0)
    kx, k1, k2 = jax.random.split(key, 3)

    x = jax.random.normal(kx, (n_samples, n_patches_p1, in_features), jnp.float32)
    w1, b1 = init_linear_params(k1, in_features, hidden_features)
    w2, b2 = init_linear_params(k2, hidden_features, out_features)

    out = mlp_forward(x, w1, b1, w2, b2)
    out = jax.block_until_ready(out)

    # Pure-JAX f32 reference (eval-mode forward).  The kernel uses bf16 matmul
    # operands (and a bf16 epilogue on v6e/v7x) with f32 accumulation, so
    # compare with a loosened tolerance.
    h_ref = x @ w1 + b1
    h_ref = 0.5 * h_ref * (1.0 + jax.lax.erf(h_ref / math.sqrt(2.0)))
    ref = h_ref @ w2 + b2

    assert out.shape == (n_samples, n_patches_p1, out_features)
    max_err = float(jnp.max(jnp.abs(out - ref)))
    assert jnp.allclose(out, ref, atol=5e-2, rtol=5e-2), max_err

    print("KERNEL_OK")
</pallas_src>

<mosaic_0001>
module attributes {stable_mosaic.version = 11 : i64} {
  func.func @mlp_kernel_resident(%arg0: i32, %arg1: memref<34x32xbf16, #tpu.memory_space<vmem>>, %arg2: memref<32x64xbf16, #tpu.memory_space<vmem>>, %arg3: memref<1x64xf32, #tpu.memory_space<vmem>>, %arg4: memref<64x32xbf16, #tpu.memory_space<vmem>>, %arg5: memref<1x32xf32, #tpu.memory_space<vmem>>, %arg6: memref<34x32xf32, #tpu.memory_space<vmem>>) attributes {dimension_semantics = [#tpu.dimension_semantics<parallel>], iteration_bounds = array<i64: 1>, scalar_prefetch = 0 : i64, scratch_operands = 0 : i64, tpu.core_type = #tpu.core_type<tc>, window_params = [{transform_indices = @transform_0, window_bounds = array<i64: 34, 32>}, {pipeline_mode = #tpu.pipeline_mode<synchronous>, transform_indices = @transform_1, window_bounds = array<i64: 32, 64>}, {pipeline_mode = #tpu.pipeline_mode<synchronous>, transform_indices = @transform_2, window_bounds = array<i64: 1, 64>}, {pipeline_mode = #tpu.pipeline_mode<synchronous>, transform_indices = @transform_3, window_bounds = array<i64: 64, 32>}, {pipeline_mode = #tpu.pipeline_mode<synchronous>, transform_indices = @transform_4, window_bounds = array<i64: 1, 32>}, {transform_indices = @transform_5, window_bounds = array<i64: 34, 32>}]} {
    %c0 = arith.constant 0 : index
    %c0_0 = arith.constant 0 : index
    %0 = vector.load %arg1[%c0, %c0_0] : memref<34x32xbf16, #tpu.memory_space<vmem>>, vector<34x32xbf16>
    %c0_1 = arith.constant 0 : index
    %c0_2 = arith.constant 0 : index
    %1 = vector.load %arg2[%c0_1, %c0_2] : memref<32x64xbf16, #tpu.memory_space<vmem>>, vector<32x64xbf16>
    %cst = arith.constant dense<0.000000e+00> : vector<34x64xf32>
    %2 = tpu.matmul %0, %1, %cst {dimension_numbers = #tpu.dot_dimension_numbers<[1], [0], [0], [1], [0, 0, 1, 1], [], []>} : vector<34x32xbf16>, vector<32x64xbf16>, vector<34x64xf32> -> vector<34x64xf32>
    %c0_3 = arith.constant 0 : index
    %c0_4 = arith.constant 0 : index
    %3 = vector.load %arg3[%c0_3, %c0_4] : memref<1x64xf32, #tpu.memory_space<vmem>>, vector<1x64xf32>
    %4 = vector.broadcast %3 : vector<1x64xf32> to vector<34x64xf32>
    %5 = arith.addf %2, %4 : vector<34x64xf32>
    %cst_5 = arith.constant 5.000000e-01 : f32
    %6 = vector.broadcast %cst_5 : f32 to vector<34x64xf32>
    %7 = arith.mulf %6, %5 : vector<34x64xf32>
    %cst_6 = arith.constant 0.707106769 : f32
    %8 = vector.broadcast %cst_6 : f32 to vector<34x64xf32>
    %9 = arith.mulf %5, %8 : vector<34x64xf32>
    %10 = math.erf %9 : vector<34x64xf32>
    %cst_7 = arith.constant 1.000000e+00 : f32
    %11 = vector.broadcast %cst_7 : f32 to vector<34x64xf32>
    %12 = arith.addf %11, %10 : vector<34x64xf32>
    %13 = arith.mulf %7, %12 : vector<34x64xf32>
    %14 = arith.truncf %13 : vector<34x64xf32> to vector<34x64xbf16>
    %c0_8 = arith.constant 0 : index
    %c0_9 = arith.constant 0 : index
    %15 = vector.load %arg4[%c0_8, %c0_9] : memref<64x32xbf16, #tpu.memory_space<vmem>>, vector<64x32xbf16>
    %cst_10 = arith.constant dense<0.000000e+00> : vector<34x32xf32>
    %16 = tpu.matmul %14, %15, %cst_10 {dimension_numbers = #tpu.dot_dimension_numbers<[1], [0], [0], [1], [0, 0, 1, 1], [], []>} : vector<34x64xbf16>, vector<64x32xbf16>, vector<34x32xf32> -> vector<34x32xf32>
    %c0_11 = arith.constant 0 : index
    %c0_12 = arith.constant 0 : index
    %17 = vector.load %arg5[%c0_11, %c0_12] : memref<1x32xf32, #tpu.memory_space<vmem>>, vector<1x32xf32>
    %18 = vector.broadcast %17 : vector<1x32xf32> to vector<34x32xf32>
    %19 = arith.addf %16, %18 : vector<34x32xf32>
    %c0_13 = arith.constant 0 : index
    %c0_14 = arith.constant 0 : index
    %20 = vector.load %arg6[%c0_13, %c0_14] : memref<34x32xf32, #tpu.memory_space<vmem>>, vector<34x32xf32>
    tpu.vector_store %arg6[%c0_13, %c0_14], %19 {strides = array<i32>} : memref<34x32xf32, #tpu.memory_space<vmem>>, vector<34x32xf32>,
    return
  }
  func.func @transform_0(%arg0: i32) -> (i32, i32) {
    %c0_i32 = arith.constant 0 : i32
    %c0_i32_0 = arith.constant 0 : i32
    return %arg0, %c0_i32 : i32, i32
  }
  func.func @transform_1(%arg0: i32) -> (i32, i32) {
    %c0_i32 = arith.constant 0 : i32
    %c0_i32_0 = arith.constant 0 : i32
    %c0_i32_1 = arith.constant 0 : i32
    return %c0_i32, %c0_i32_0 : i32, i32
  }
  func.func @transform_2(%arg0: i32) -> (i32, i32) {
    %c0_i32 = arith.constant 0 : i32
    %c0_i32_0 = arith.constant 0 : i32
    %c0_i32_1 = arith.constant 0 : i32
    return %c0_i32, %c0_i32_0 : i32, i32
  }
  func.func @transform_3(%arg0: i32) -> (i32, i32) {
    %c0_i32 = arith.constant 0 : i32
    %c0_i32_0 = arith.constant 0 : i32
    %c0_i32_1 = arith.constant 0 : i32
    return %c0_i32, %c0_i32_0 : i32, i32
  }
  func.func @transform_4(%arg0: i32) -> (i32, i32) {
    %c0_i32 = arith.constant 0 : i32
    %c0_i32_0 = arith.constant 0 : i32
    %c0_i32_1 = arith.constant 0 : i32
    return %c0_i32, %c0_i32_0 : i32, i32
  }
  func.func @transform_5(%arg0: i32) -> (i32, i32) {
    %c0_i32 = arith.constant 0 : i32
    %c0_i32_0 = arith.constant 0 : i32
    return %arg0, %c0_i32 : i32, i32
  }
}

</mosaic_0001>

<llo_original>
// kernel: tpu_custom_call.1
$region0: #{tpu_custom_call.1}
  #allocation0 [shape = 'u32[]', space=smem, size = 0x4, offset = 0x4, fixed_abs, tag = 'smem constant byte address 0x4 - core index']
  #allocation1 [shape = 'u32[144,128]{1,0:T(1,128)}', space=vmem, size = 0x12000, scoped, tag = 'internal scratch']
  %s0 = inlined_call_operand.vmem [shape: bf16[34,32], index: 0, kind: input, shape index: {}]
  %s1 = inlined_call_operand.vmem [shape: bf16[32,64], index: 1, kind: input, shape index: {}]
  %s2 = inlined_call_operand.vmem [shape: f32[1,64], index: 2, kind: input, shape index: {}]
  %s3 = inlined_call_operand.vmem [shape: bf16[64,32], index: 3, kind: input, shape index: {}]
  %s4 = inlined_call_operand.vmem [shape: f32[1,32], index: 4, kind: input, shape index: {}]
  %s5 = inlined_call_operand.vmem [shape: f32[34,32], index: 5, kind: output, shape index: {}]
  %s6 = sld [smem:[#allocation0]]
  $region30: #{tpu_custom_call.1} parent=0
    _
  %s8 = ssub.s32 1, %s6
  %s9 = scalar_select 0, %s8, %s6
  // Predicated region
  $region2: #{tpu_custom_call.1} parent=0 // pred_check
    _
  $region3: #{tpu_custom_call.1} parent=0 // pred_check_branch
    %11 = sbr.rel (0) target = $region5
  $region4: #{tpu_custom_call.1} parent=0 // pred_region
    _
  $region5: #{tpu_custom_call.1} parent=0 // pred_fallthru
    _
  // Predicated region
  $region6: #{tpu_custom_call.1} parent=0 // pred_check
    _
  $region7: #{tpu_custom_call.1} parent=0 // pred_check_branch
    %13 = sbr.rel (0) target = $region9
  $region8: #{tpu_custom_call.1} parent=0 // pred_region
    _
  $region9: #{tpu_custom_call.1} parent=0 // pred_fallthru
    _
  // Predicated region
  $region10: #{tpu_custom_call.1} parent=0 // pred_check
    _
  $region11: #{tpu_custom_call.1} parent=0 // pred_check_branch
    %15 = sbr.rel (0) target = $region13
  $region12: #{tpu_custom_call.1} parent=0 // pred_region
    _
  $region13: #{tpu_custom_call.1} parent=0 // pred_fallthru
    _
  // Predicated region
  $region14: #{tpu_custom_call.1} parent=0 // pred_check
    _
  $region15: #{tpu_custom_call.1} parent=0 // pred_check_branch
    %17 = sbr.rel (0) target = $region17
  $region16: #{tpu_custom_call.1} parent=0 // pred_region
    _
  $region17: #{tpu_custom_call.1} parent=0 // pred_fallthru
    _
  // Predicated region
  $region18: #{tpu_custom_call.1} parent=0 // pred_check
    _
  $region19: #{tpu_custom_call.1} parent=0 // pred_check_branch
    %19 = sbr.rel (0) target = $region21
  $region20: #{tpu_custom_call.1} parent=0 // pred_region
    _
  $region21: #{tpu_custom_call.1} parent=0 // pred_fallthru
    _
  %v21 = vld [vmem:[%s0] sm:$0xf]
  %v22 = vld [vmem:[%s0 + $0x4] sm:$0xf]
  %v23 = vld [vmem:[%s0 + $0x8] sm:$0xf]
  %v24 = vld [vmem:[%s0 + $0xc] sm:$0xf]
  %v25 = vld [vmem:[%s0 + $0x10] sm:$0x1]
  %v26 = vld [vmem:[%s1] sm:$0xf]
  %v27 = vld [vmem:[%s1 + $0x4] sm:$0xf]
  %v28 = vld [vmem:[%s1 + $0x8] sm:$0xf]
  %v29 = vld [vmem:[%s1 + $0xc] sm:$0xf]
  %v30 = vld [vmem:[%s2] sm:$0x1]
  %v32 = vlaneseq
  %v33 = vshrl.u32 %v32, 7
  %v34 = vsub.s32 0, %v33
  %v35 = vrot.slane %v30, %v34
  %v42 = vunpack.c.l.b16 %v21
  %v43 = vunpack.c.l.b16 %v22
  %v44 = vunpack.c.l.b16 %v23
  %v45 = vunpack.c.l.b16 %v24
  %v46 = vunpack.c.l.b16 %v25
  %v47 = vpack.c.b16 %v43, %v42
  %v48 = vpack.c.b16 %v45, %v44
  %v49 = vpack.c.b16 %v46, %v46
  %v54 = vunpack.c.l.b16 %v26
  %v55 = vunpack.c.l.b16 %v27
  %v56 = vunpack.c.l.b16 %v28
  %v57 = vunpack.c.l.b16 %v29
  %v58 = vpack.c.b16 %v55, %v54
  %v59 = vpack.c.b16 %v57, %v56
  %vm62 = vcmask 261120
  %v64 = vsel %vm62, %v47, 0
  %v67 = vsel %vm62, %v48, 0
  %v70 = vsel %vm62, %v49, 0
  %72 = vmatprep.subr.bf16.mxu0 0
  %73 = vmatpush1.bf16.msra.mxu0 %v58
  %74 = vmatprep.subr.bf16.mxu0 0
  %75 = vmatpush1.bf16.msra.mxu0 %v59
  %76 = vmatprep.subr.bf16.mxu0 0
  %77 = vmatpush1.bf16.msra.mxu0 0
  %78 = vmatprep.subr.bf16.mxu0 0
  %79 = vmatpush1.bf16.msra.mxu0 0
  %80 = vmatprep.subr.bf16.mxu0 0
  %81 = vmatpush1.bf16.msra.mxu0 0
  %82 = vmatprep.subr.bf16.mxu0 0
  %83 = vmatpush1.bf16.msra.mxu0 0
  %84 = vmatprep.subr.bf16.mxu0 0
  %85 = vmatpush1.bf16.msra.mxu0 0
  %86 = vmatprep.subr.bf16.mxu0 0
  %87 = vmatpush1.bf16.msra.mxu0 0
  %88 = vmatprep.subr.bf16.mxu0 0
  %89 = vmatpush1.bf16.msra.mxu0 0
  %90 = vmatprep.subr.bf16.mxu0 0
  %91 = vmatpush1.bf16.msra.mxu0 0
  %92 = vmatprep.subr.bf16.mxu0 0
  %93 = vmatpush1.bf16.msra.mxu0 0
  %94 = vmatprep.subr.bf16.mxu0 0
  %95 = vmatpush1.bf16.msra.mxu0 0
  %96 = vmatprep.subr.bf16.mxu0 0
  %97 = vmatpush1.bf16.msra.mxu0 0
  %98 = vmatprep.subr.bf16.mxu0 0
  %99 = vmatpush1.bf16.msra.mxu0 0
  %100 = vmatprep.subr.bf16.mxu0 0
  %101 = vmatpush1.bf16.msra.mxu0 0
  %102 = vmatprep.subr.bf16.mxu0 0
  %103 = vmatpush1.bf16.msra.mxu0 0
  %104 = vmatprep.mubr.bf16.mxu0 0
  %105 = vmatmul.mubr.bf16.gmra.mrb[0].mxu0 %v64
  %v106 = vpop.f32.mrb[0].mxu0
  %v107 = vadd.f32 %v35, %v106
  %v108 = vpop.f32.mrb[0].mxu0
  %v109 = vpop.f32.mrb[0].mxu0
  %v110 = vadd.f32 %v35, %v109
  %v111 = vpop.f32.mrb[0].mxu0
  %112 = vmatprep.mubr.bf16.mxu0 0
  %113 = vmatmul.mubr.bf16.gmra.mrb[0].mxu0 %v67
  %v114 = vpop.f32.mrb[0].mxu0
  %v115 = vadd.f32 %v35, %v114
  %v116 = vpop.f32.mrb[0].mxu0
  %v117 = vpop.f32.mrb[0].mxu0
  %v118 = vadd.f32 %v35, %v117
  %v119 = vpop.f32.mrb[0].mxu0
  %120 = vmatprep.mubr.bf16.mxu0 0
  %121 = vmatmul.mubr.bf16.gmra.mrb[0].mxu0 %v70
  %v122 = vpop.f32.mrb[0].mxu0
  %v123 = vadd.f32 %v35, %v122
  %v124 = vpop.f32.mrb[0].mxu0
  %v125 = vpop.f32.mrb[0].mxu0
  %v126 = vpop.f32.mrb[0].mxu0
  %127 = vdwg.mxu0
  %v128 = vmul.f32 %v107, 0.5
  %v129 = vmul.f32 %v110, 0.5
  %v130 = vmul.f32 %v115, 0.5
  %v131 = vmul.f32 %v118, 0.5
  %v132 = vmul.f32 %v123, 0.5
  %v133 = vmul.f32 %v107, 0.70710677
  %v134 = vmul.f32 %v110, 0.70710677
  %v135 = vmul.f32 %v115, 0.70710677
  %v136 = vmul.f32 %v118, 0.70710677
  %v137 = vmul.f32 %v123, 0.70710677
  %v138 = verf.f32.pop %v133
  %v139 = verf.f32.pop %v134
  %v140 = verf.f32.pop %v135
  %v141 = verf.f32.pop %v136
  %v142 = verf.f32.pop %v137
  %v143 = vadd.f32 %v138, 1.0
  %v144 = vadd.f32 %v139, 1.0
  %v145 = vadd.f32 %v140, 1.0
  %v146 = vadd.f32 %v141, 1.0
  %v147 = vadd.f32 %v142, 1.0
  %v148 = vmul.f32 %v128, %v143
  %v149 = vmul.f32 %v129, %v144
  %v150 = vmul.f32 %v130, %v145
  %v151 = vmul.f32 %v131, %v146
  %v152 = vmul.f32 %v132, %v147
  %v153 = vpack.c.bf16 %v149, %v148
  %v154 = vpack.c.bf16 %v151, %v150
  %v155 = vpack.c.bf16 %v152, %v152
  %v156 = vld [vmem:[%s3] sm:$0xf]
  %v157 = vld [vmem:[%s3 + $0x4] sm:$0xf]
  %v158 = vld [vmem:[%s3 + $0x8] sm:$0xf]
  %v159 = vld [vmem:[%s3 + $0xc] sm:$0xf]
  %v160 = vld [vmem:[%s3 + $0x10] sm:$0xf]
  %v161 = vld [vmem:[%s3 + $0x14] sm:$0xf]
  %v162 = vld [vmem:[%s3 + $0x18] sm:$0xf]
  %v163 = vld [vmem:[%s3 + $0x1c] sm:$0xf]
  %v164 = vld [vmem:[%s4] sm:$0x1]
  %v166 = vlaneseq
  %v167 = vshrl.u32 %v166, 7
  %v168 = vsub.s32 0, %v167
  %v169 = vrot.slane %v164, %v168
  %v179 = vunpack.c.l.b16 %v156
  %v180 = vunpack.c.l.b16 %v157
  %v181 = vunpack.c.l.b16 %v158
  %v182 = vunpack.c.l.b16 %v159
  %v183 = vunpack.c.l.b16 %v160
  %v184 = vunpack.c.l.b16 %v161
  %v185 = vunpack.c.l.b16 %v162
  %v186 = vunpack.c.l.b16 %v163
  %v187 = vpack.c.b16 %v180, %v179
  %v188 = vpack.c.b16 %v182, %v181
  %v189 = vpack.c.b16 %v184, %v183
  %v190 = vpack.c.b16 %v186, %v185
  %vm195 = vcmask 523264
  %v197 = vsel %vm195, %v153, 0
  %v200 = vsel %vm195, %v154, 0
  %v203 = vsel %vm195, %v155, 0
  %205 = vmatprep.subr.bf16.mxu0 0
  %206 = vmatpush1.bf16.msra.mxu0 %v187
  %207 = vmatprep.subr.bf16.mxu0 0
  %208 = vmatpush1.bf16.msra.mxu0 %v188
  %209 = vmatprep.subr.bf16.mxu0 0
  %210 = vmatpush1.bf16.msra.mxu0 %v189
  %211 = vmatprep.subr.bf16.mxu0 0
  %212 = vmatpush1.bf16.msra.mxu0 %v190
  %213 = vmatprep.subr.bf16.mxu0 0
  %214 = vmatpush1.bf16.msra.mxu0 0
  %215 = vmatprep.subr.bf16.mxu0 0
  %216 = vmatpush1.bf16.msra.mxu0 0
  %217 = vmatprep.subr.bf16.mxu0 0
  %218 = vmatpush1.bf16.msra.mxu0 0
  %219 = vmatprep.subr.bf16.mxu0 0
  %220 = vmatpush1.bf16.msra.mxu0 0
  %221 = vmatprep.subr.bf16.mxu0 0
  %222 = vmatpush1.bf16.msra.mxu0 0
  %223 = vmatprep.subr.bf16.mxu0 0
  %224 = vmatpush1.bf16.msra.mxu0 0
  %225 = vmatprep.subr.bf16.mxu0 0
  %226 = vmatpush1.bf16.msra.mxu0 0
  %227 = vmatprep.subr.bf16.mxu0 0
  %228 = vmatpush1.bf16.msra.mxu0 0
  %229 = vmatprep.subr.bf16.mxu0 0
  %230 = vmatpush1.bf16.msra.mxu0 0
  %231 = vmatprep.subr.bf16.mxu0 0
  %232 = vmatpush1.bf16.msra.mxu0 0
  %233 = vmatprep.subr.bf16.mxu0 0
  %234 = vmatpush1.bf16.msra.mxu0 0
  %235 = vmatprep.subr.bf16.mxu0 0
  %236 = vmatpush1.bf16.msra.mxu0 0
  %237 = vmatprep.mubr.bf16.mxu0 0
  %238 = vmatmul.mubr.bf16.gmra.mrb[0].mxu0 %v197
  %v239 = vpop.f32.mrb[0].mxu0
  %v240 = vadd.f32 %v169, %v239
  %v241 = vpop.f32.mrb[0].mxu0
  %v242 = vpop.f32.mrb[0].mxu0
  %v243 = vadd.f32 %v169, %v242
  %v244 = vpop.f32.mrb[0].mxu0
  %245 = vmatprep.mubr.bf16.mxu0 0
  %246 = vmatmul.mubr.bf16.gmra.mrb[0].mxu0 %v200
  %v247 = vpop.f32.mrb[0].mxu0
  %v248 = vadd.f32 %v169, %v247
  %v249 = vpop.f32.mrb[0].mxu0
  %v250 = vpop.f32.mrb[0].mxu0
  %v251 = vadd.f32 %v169, %v250
  %v252 = vpop.f32.mrb[0].mxu0
  %253 = vmatprep.mubr.bf16.mxu0 0
  %254 = vmatmul.mubr.bf16.gmra.mrb[0].mxu0 %v203
  %v255 = vpop.f32.mrb[0].mxu0
  %v256 = vadd.f32 %v169, %v255
  %v257 = vpop.f32.mrb[0].mxu0
  %v258 = vpop.f32.mrb[0].mxu0
  %v259 = vpop.f32.mrb[0].mxu0
  %260 = vdwg.mxu0
  %261 = vst.msk [vmem:[%s5] sm:$0xff] %vm62, %v240
  %262 = vst.msk [vmem:[%s5 + $0x8] sm:$0xff] %vm62, %v243
  %263 = vst.msk [vmem:[%s5 + $0x10] sm:$0xff] %vm62, %v248
  %264 = vst.msk [vmem:[%s5 + $0x18] sm:$0xff] %vm62, %v251
  %vm265 = vcmask 254976
  %266 = vst.msk [vmem:[%s5 + $0x20] sm:$0x3] %vm265, %v256
  // Predicated region
  $region22: #{tpu_custom_call.1} parent=0 // pred_check
    _
  $region23: #{tpu_custom_call.1} parent=0 // pred_check_branch
    %268 = sbr.rel (0) target = $region25
  $region24: #{tpu_custom_call.1} parent=0 // pred_region
    _
  $region25: #{tpu_custom_call.1} parent=0 // pred_fallthru
    _
  // Predicated region
  $region26: #{tpu_custom_call.1} parent=0 // pred_check
    _
  $region27: #{tpu_custom_call.1} parent=0 // pred_check_branch
    %270 = sbr.rel (0) target = $region29
  $region28: #{tpu_custom_call.1} parent=0 // pred_region
    _
  $region29: #{tpu_custom_call.1} parent=0 // pred_fallthru
    _

</llo_original>
